<compile_context>
chip_gen: v7x
topology: tpu7x:2x2x1
jax: 0.10.0
libtpu: 0.0.40
codegen_flags: <defaults>
</compile_context>

<pallas_src>
import jax
import jax.numpy as jnp
from jax.experimental import pallas as pl
from jax.experimental.pallas import tpu as pltpu


def _round_up(x: int, m: int) -> int:
    return ((x + m - 1) // m) * m


def make_focal_loss_kernel(alpha=None, gamma: float = 2.0, reduction: str = "mean",
                           max_tile_bytes: int = 4 * 1024 * 1024):
    """Returns a callable (logits[N, C], targets[N] int) -> focal loss."""
    if alpha is not None:
        raise NotImplementedError("alpha (class weights) not supported")  # TODO(synk)
    if reduction not in ("mean", "sum", "none"):
        raise ValueError(f"bad reduction: {reduction}")

    def focal_loss(logits, targets):
        n, c = logits.shape
        itemsize = jnp.dtype(logits.dtype).itemsize

        # ---- tiling over N (rows) --------------------------------------
        # Keep one (TN, C) logits buffer <= max_tile_bytes so the pipeline
        # can double-buffer on every TPU generation (incl. v7x's 64 MiB VMEM)
        # and the in-kernel f32 temporaries still fit the scoped limit.
        max_rows = max(8, (max_tile_bytes // max(1, c * itemsize)) // 8 * 8)
        tile_n = min(1024, max_rows, _round_up(n, 8))
        n_pad = _round_up(n, tile_n)
        num_tiles = n_pad // tile_n

        if n_pad != n:
            logits = jnp.pad(logits, ((0, n_pad - n), (0, 0)))
            targets = jnp.pad(targets, (0, n_pad - n))
        tgt2d = targets.astype(jnp.int32).reshape(n_pad, 1)

        # ---- shared per-tile math --------------------------------------
        def _focal_rows(logits_ref, targets_ref):
            x = logits_ref[...].astype(jnp.float32)          # upcast in VMEM
            tgt = targets_ref[...]                           # (TN, 1) int32
            tn, cc = x.shape

            # numerically-stable log-sum-exp over classes (lane axis)
            m = jnp.max(x, axis=-1, keepdims=True)
            lse = m + jnp.log(jnp.sum(jnp.exp(x - m), axis=-1, keepdims=True))

            # gather the target-class logit with a select (no one-hot cast+mul)
            col = jax.lax.broadcasted_iota(jnp.int32, (tn, cc), 1)
            tgt_logit = jnp.sum(jnp.where(col == tgt, x, 0.0),
                                axis=-1, keepdims=True)

            ce = lse - tgt_logit                             # (TN, 1), >= 0
            # 1 - exp(-ce) with an expm1-accurate small-ce branch (avoids
            # catastrophic cancellation for easy samples, pt ~= 1).
            one_minus_pt = jnp.where(
                ce < 1e-3,
                ce * (1.0 - 0.5 * ce + (1.0 / 6.0) * ce * ce),
                1.0 - jnp.exp(-ce))

            if float(gamma).is_integer() and 0 <= gamma <= 8:
                # integer gamma: repeated multiply on the VPU, no pow/EUP chain
                mod = jnp.ones_like(ce)
                for _ in range(int(gamma)):
                    mod = mod * one_minus_pt
            else:
                mod = one_minus_pt ** jnp.float32(gamma)
            return mod * ce                                  # (TN, 1)

        def sum_kernel(logits_ref, targets_ref, out_ref):
            focal = _focal_rows(logits_ref, targets_ref)
            # mask rows that are only padding
            row = (jax.lax.broadcasted_iota(jnp.int32, focal.shape, 0)
                   + pl.program_id(0) * tile_n)
            psum = jnp.sum(jnp.where(row < n, focal, 0.0))
            # Broadcast this tile's partial sum across a full lane-dense
            # (8, 128) block: unmasked store, (8,128)-tiling rule satisfied,
            # and no serial accumulator -> the N grid axis stays 'parallel'.
            out_ref[...] = jnp.full(out_ref.shape, psum, dtype=jnp.float32)

        def none_kernel(logits_ref, targets_ref, out_ref):
            # TODO(synk): lane-dense output slab for huge-N 'none'; the masked
            # (TN, 1) store here is <= 1/C of the logits read traffic.
            out_ref[...] = _focal_rows(logits_ref, targets_ref)

        # ---- pallas_call plumbing --------------------------------------
        in_specs = [
            pl.BlockSpec((tile_n, c), lambda i: (i, 0)),     # logits row-tile
            pl.BlockSpec((tile_n, 1), lambda i: (i, 0)),     # targets row-tile
        ]
        cparams = pltpu.CompilerParams(
            dimension_semantics=("parallel",),
            vmem_limit_bytes=32 * 1024 * 1024)
        cost = pl.CostEstimate(
            flops=int(8 * n_pad * c),
            transcendentals=int(n_pad * c + 4 * n_pad),
            bytes_accessed=int(n_pad * c * itemsize + 8 * n_pad))

        if reduction in ("mean", "sum"):
            partial = pl.pallas_call(
                sum_kernel,
                grid=(num_tiles,),
                out_shape=jax.ShapeDtypeStruct((num_tiles * 8, 128), jnp.float32),
                in_specs=in_specs,
                out_specs=pl.BlockSpec((8, 128), lambda i: (i, 0)),
                compiler_params=cparams,
                cost_estimate=cost,
            )(logits, tgt2d)
            total = jnp.sum(partial[::8, 0])     # one scalar per tile block
            if reduction == "mean":
                return total / jnp.float32(n)
            return total
        else:  # 'none'
            out = pl.pallas_call(
                none_kernel,
                grid=(num_tiles,),
                out_shape=jax.ShapeDtypeStruct((n_pad, 1), jnp.float32),
                in_specs=in_specs,
                out_specs=pl.BlockSpec((tile_n, 1), lambda i: (i, 0)),
                compiler_params=cparams,
                cost_estimate=cost,
            )(logits, tgt2d)
            return out[:n, 0]

    return focal_loss


def focal_loss_ref(logits, targets, gamma=2.0, reduction="mean"):
    """Plain-JAX reference mirroring F.cross_entropy + focal modulation."""
    logits = logits.astype(jnp.float32)
    lse = jax.nn.logsumexp(logits, axis=-1)
    tgt_logit = jnp.take_along_axis(logits, targets[:, None], axis=-1)[:, 0]
    ce = lse - tgt_logit
    pt = jnp.exp(-ce)
    focal = (1.0 - pt) ** gamma * ce
    if reduction == "mean":
        return jnp.mean(focal)
    elif reduction == "sum":
        return jnp.sum(focal)
    return focal


if __name__ == "__main__":
    key = jax.random.PRNGKey(0)

    # Case 1: module defaults -- FocalLoss(alpha=None, gamma=2.0, 'mean').
    batch, num_classes = 8, 16
    k1, k2 = jax.random.split(key)
    logits = jax.random.normal(k1, (batch, num_classes), dtype=jnp.float32)
    targets = jax.random.randint(k2, (batch,), 0, num_classes, dtype=jnp.int32)

    loss = make_focal_loss_kernel(gamma=2.0, reduction="mean")(logits, targets)
    jax.block_until_ready(loss)
    ref = focal_loss_ref(logits, targets, gamma=2.0, reduction="mean")
    assert jnp.allclose(loss, ref, rtol=1e-5, atol=1e-6), (loss, ref)

    # Case 2: multi-tile grid + row padding/masking ('sum' and 'none').
    # A tiny per-tile byte budget forces TN=8 -> 5 tiles for N=37 (3 padded rows).
    n2, c2 = 37, 128
    k3, k4 = jax.random.split(k2)
    logits2 = jax.random.normal(k3, (n2, c2), dtype=jnp.float32)
    targets2 = jax.random.randint(k4, (n2,), 0, c2, dtype=jnp.int32)

    s = make_focal_loss_kernel(gamma=2.0, reduction="sum",
                               max_tile_bytes=8 * c2 * 4)(logits2, targets2)
    jax.block_until_ready(s)
    s_ref = focal_loss_ref(logits2, targets2, gamma=2.0, reduction="sum")
    assert jnp.allclose(s, s_ref, rtol=1e-5, atol=1e-5), (s, s_ref)

    f = make_focal_loss_kernel(gamma=2.0, reduction="none",
                               max_tile_bytes=8 * c2 * 4)(logits2, targets2)
    jax.block_until_ready(f)
    f_ref = focal_loss_ref(logits2, targets2, gamma=2.0, reduction="none")
    assert jnp.allclose(f, f_ref, rtol=1e-5, atol=1e-6), (f, f_ref)

    # Case 3: bf16 logits stay bf16 on the HBM wire; upcast happens in VMEM.
    logits_bf = logits.astype(jnp.bfloat16)
    loss_bf = make_focal_loss_kernel(gamma=2.0, reduction="mean")(logits_bf, targets)
    jax.block_until_ready(loss_bf)
    ref_bf = focal_loss_ref(logits_bf.astype(jnp.float32), targets,
                            gamma=2.0, reduction="mean")
    assert jnp.allclose(loss_bf, ref_bf, rtol=1e-4, atol=1e-5), (loss_bf, ref_bf)

    print("KERNEL_OK")
</pallas_src>

<mosaic_0001>
module attributes {stable_mosaic.version = 11 : i64} {
  func.func @sum_kernel(%arg0: i32, %arg1: memref<8x16xf32, #tpu.memory_space<vmem>>, %arg2: memref<8x1xi32, #tpu.memory_space<vmem>>, %arg3: memref<8x128xf32, #tpu.memory_space<vmem>>) attributes {dimension_semantics = [#tpu.dimension_semantics<parallel>], iteration_bounds = array<i64: 1>, scalar_prefetch = 0 : i64, scratch_operands = 0 : i64, tpu.core_type = #tpu.core_type<tc>, window_params = [{transform_indices = @transform_0, window_bounds = array<i64: 8, 16>}, {transform_indices = @transform_1, window_bounds = array<i64: 8, 1>}, {transform_indices = @transform_2, window_bounds = array<i64: 8, 128>}]} {
    %c0 = arith.constant 0 : index
    %c0_0 = arith.constant 0 : index
    %0 = vector.load %arg1[%c0, %c0_0] : memref<8x16xf32, #tpu.memory_space<vmem>>, vector<8x16xf32>
    %c0_1 = arith.constant 0 : index
    %c0_2 = arith.constant 0 : index
    %1 = vector.load %arg2[%c0_1, %c0_2] : memref<8x1xi32, #tpu.memory_space<vmem>>, vector<8x1xi32>
    %cst = arith.constant dense<0xFF800000> : vector<8xf32>
    %2 = vector.multi_reduction <maximumf>, %0, %cst [1] : vector<8x16xf32> to vector<8xf32>
    %3 = vector.shape_cast %2 : vector<8xf32> to vector<8x1xf32>
    %4 = vector.broadcast %3 : vector<8x1xf32> to vector<8x16xf32>
    %5 = arith.subf %0, %4 : vector<8x16xf32>
    %6 = math.exp %5 : vector<8x16xf32>
    %cst_3 = arith.constant dense<0.000000e+00> : vector<8xf32>
    %7 = vector.multi_reduction <add>, %6, %cst_3 [1] : vector<8x16xf32> to vector<8xf32>
    %8 = vector.shape_cast %7 : vector<8xf32> to vector<8x1xf32>
    %9 = math.log %8 : vector<8x1xf32>
    %10 = arith.addf %3, %9 : vector<8x1xf32>
    %11 = tpu.iota {dimensions = array<i32: 1>} : vector<8x16xi32>
    %12 = vector.broadcast %1 : vector<8x1xi32> to vector<8x16xi32>
    %13 = arith.cmpi eq, %11, %12 : vector<8x16xi32>
    %cst_4 = arith.constant 0.000000e+00 : f32
    %14 = vector.broadcast %cst_4 : f32 to vector<8x16xf32>
    %15 = arith.select %13, %0, %14 : vector<8x16xi1>, vector<8x16xf32>
    %cst_5 = arith.constant dense<0.000000e+00> : vector<8xf32>
    %16 = vector.multi_reduction <add>, %15, %cst_5 [1] : vector<8x16xf32> to vector<8xf32>
    %17 = vector.shape_cast %16 : vector<8xf32> to vector<8x1xf32>
    %18 = arith.subf %10, %17 : vector<8x1xf32>
    %cst_6 = arith.constant 1.000000e-03 : f32
    %19 = vector.broadcast %cst_6 : f32 to vector<8x1xf32>
    %20 = arith.cmpf olt, %18, %19 : vector<8x1xf32>
    %cst_7 = arith.constant 5.000000e-01 : f32
    %21 = vector.broadcast %cst_7 : f32 to vector<8x1xf32>
    %22 = arith.mulf %21, %18 : vector<8x1xf32>
    %cst_8 = arith.constant 1.000000e+00 : f32
    %23 = vector.broadcast %cst_8 : f32 to vector<8x1xf32>
    %24 = arith.subf %23, %22 : vector<8x1xf32>
    %cst_9 = arith.constant 0.166666672 : f32
    %25 = vector.broadcast %cst_9 : f32 to vector<8x1xf32>
    %26 = arith.mulf %25, %18 : vector<8x1xf32>
    %27 = arith.mulf %26, %18 : vector<8x1xf32>
    %28 = arith.addf %24, %27 : vector<8x1xf32>
    %29 = arith.mulf %18, %28 : vector<8x1xf32>
    %cst_10 = arith.constant 0.000000e+00 : f32
    %30 = vector.broadcast %cst_10 : f32 to vector<8x1xf32>
    %31 = arith.subf %30, %18 : vector<8x1xf32>
    %32 = math.exp %31 : vector<8x1xf32>
    %cst_11 = arith.constant 1.000000e+00 : f32
    %33 = vector.broadcast %cst_11 : f32 to vector<8x1xf32>
    %34 = arith.subf %33, %32 : vector<8x1xf32>
    %35 = arith.select %20, %29, %34 : vector<8x1xi1>, vector<8x1xf32>
    %cst_12 = arith.constant 1.000000e+00 : f32
    %36 = vector.broadcast %cst_12 : f32 to vector<8x1xf32>
    %37 = arith.mulf %36, %35 : vector<8x1xf32>
    %38 = arith.mulf %37, %35 : vector<8x1xf32>
    %39 = arith.mulf %38, %18 : vector<8x1xf32>
    %40 = tpu.iota {dimensions = array<i32: 0>} : vector<8x1xi32>
    %c8_i32 = arith.constant 8 : i32
    %41 = arith.muli %arg0, %c8_i32 : i32
    %42 = vector.broadcast %41 : i32 to vector<8x1xi32>
    %43 = arith.addi %40, %42 : vector<8x1xi32>
    %c8_i32_13 = arith.constant 8 : i32
    %44 = vector.broadcast %c8_i32_13 : i32 to vector<8x1xi32>
    %45 = arith.cmpi slt, %43, %44 : vector<8x1xi32>
    %cst_14 = arith.constant 0.000000e+00 : f32
    %46 = vector.broadcast %cst_14 : f32 to vector<8x1xf32>
    %47 = arith.select %45, %39, %46 : vector<8x1xi1>, vector<8x1xf32>
    %48 = vector.shape_cast %47 : vector<8x1xf32> to vector<1x8x1xf32>
    %cst_15 = arith.constant dense<0.000000e+00> : vector<1xf32>
    %49 = vector.multi_reduction <add>, %48, %cst_15 [1, 2] : vector<1x8x1xf32> to vector<1xf32>
    %50 = vector.shape_cast %49 : vector<1xf32> to vector<1x1x1xf32>
    %51 = vector.extract %50[0, 0, 0] : f32 from vector<1x1x1xf32>
    %52 = vector.broadcast %51 : f32 to vector<8x128xf32>
    %c0_16 = arith.constant 0 : index
    %c0_17 = arith.constant 0 : index
    %53 = vector.load %arg3[%c0_16, %c0_17] : memref<8x128xf32, #tpu.memory_space<vmem>>, vector<8x128xf32>
    tpu.vector_store %arg3[%c0_16, %c0_17], %52 {strides = array<i32>} : memref<8x128xf32, #tpu.memory_space<vmem>>, vector<8x128xf32>,
    return
  }
  func.func @transform_0(%arg0: i32) -> (i32, i32) {
    %c0_i32 = arith.constant 0 : i32
    %c0_i32_0 = arith.constant 0 : i32
    return %arg0, %c0_i32 : i32, i32
  }
  func.func @transform_1(%arg0: i32) -> (i32, i32) {
    %c0_i32 = arith.constant 0 : i32
    %c0_i32_0 = arith.constant 0 : i32
    return %arg0, %c0_i32 : i32, i32
  }
  func.func @transform_2(%arg0: i32) -> (i32, i32) {
    %c0_i32 = arith.constant 0 : i32
    %c0_i32_0 = arith.constant 0 : i32
    return %arg0, %c0_i32 : i32, i32
  }
}

</mosaic_0001>

<llo_original>
// kernel: tpu_custom_call.1
$region0: #{tpu_custom_call.1}
  #allocation0 [shape = 'u32[]', space=smem, size = 0x4, offset = 0x4, fixed_abs, tag = 'smem constant byte address 0x4 - core index']
  #allocation1 [shape = 'u32[144,128]{1,0:T(1,128)}', space=vmem, size = 0x12000, scoped, tag = 'internal scratch']
  %s0 = inlined_call_operand.vmem [shape: f32[8,16], index: 0, kind: input, shape index: {}]
  %s1 = inlined_call_operand.vmem [shape: s32[8,1], index: 1, kind: input, shape index: {}]
  %s2 = inlined_call_operand.hbm [shape: f32[8,128], index: 2, kind: output, shape index: {}]
  %s3 = sld [smem:[#allocation0]]
  $region18: #{tpu_custom_call.1} parent=0
    _
  %s5 = ssub.s32 1, %s3
  %s6 = scalar_select 0, %s5, %s3
  $region1: #{tpu_custom_call.1} parent=0
    #allocation2 [shape = 'u8[4096]{0}', space=vmem, size = 0x1000, scoped, tag = 'output window, operand 0, single buffered']
    #allocation3 [shape = 's32[1]{0}', space=sflag, size = 0x4, scoped, tag = 'scoped memory for tpu_custom_call.1']
    %7 = vsyncpa [#allocation3], 0
    // Predicated region
    $region2: #{tpu_custom_call.1} parent=1 // pred_check
      _
    $region3: #{tpu_custom_call.1} parent=1 // pred_check_branch
      %9 = sbr.rel (0) target = $region5
    $region4: #{tpu_custom_call.1} parent=1 // pred_region
      _
    $region5: #{tpu_custom_call.1} parent=1 // pred_fallthru
      _
    // Predicated region
    $region6: #{tpu_custom_call.1} parent=1 // pred_check
      _
    $region7: #{tpu_custom_call.1} parent=1 // pred_check_branch
      %11 = sbr.rel (0) target = $region9
    $region8: #{tpu_custom_call.1} parent=1 // pred_region
      _
    $region9: #{tpu_custom_call.1} parent=1 // pred_fallthru
      _
    %v12 = vld [vmem:[%s0] sm:$0xff]
    %v13 = vld [vmem:[%s1] sm:$0xff]
    %vm14 = vcmask 130048
    %v15 = vsel %vm14, %v12, -inf
    %16 = vmax.xlane.f32.xlu0 %v15
    %v17 = vpop.xlane.xlu0 %16
    %v18 = vsub.f32 %v12, %v17
    %v19 = vmul.f32 %v18, 1.442695
    %v20 = vpow.pop %v19
    %v21 = vsel %vm14, %v20, 0.0
    %22 = vadd.xlane.f32.xlu0 %v21
    %v23 = vpop.xlane.xlu0 %22
    %v24 = vlog2.pop %v23
    %v25 = vmul.f32 %v24, 0.6931472
    %v26 = vadd.f32 %v17, %v25
    %v27 = vlaneseq
    %v28 = vand.u32 %v27, 127
    %29 = vset.pattern.permute.xlu0 0
    %30 = vperm.xlu0 %29, %v13
    %v31 = vpop.permute.xlu0 %30
    %vm32 = vcmp.eq.s32.totalorder %v28, %v31
    %v33 = vsel %vm32, %v12, 0.0
    %v34 = vsel %vm14, %v33, 0.0
    %35 = vadd.xlane.f32.xlu0 %v34
    %v36 = vpop.xlane.xlu0 %35
    %v37 = vsub.f32 %v26, %v36
    %vm38 = vcmp.lt.f32.partialorder %v37, 0.001
    %v39 = vmul.f32 %v37, 0.5
    %v40 = vsub.f32 1.0, %v39
    %v41 = vmul.f32 %v37, 0.16666667
    %v42 = vmul.f32 %v41, %v37
    %v43 = vadd.f32 %v40, %v42
    %v44 = vmul.f32 %v37, %v43
    %v45 = vsub.f32 0.0, %v37
    %v46 = vmul.f32 %v45, 1.442695
    %v47 = vpow.pop %v46
    %v48 = vsub.f32 1.0, %v47
    %v49 = vsel %vm38, %v44, %v48
    %v50 = vmul.f32 %v49, %v49
    %v51 = vmul.f32 %v50, %v37
    %v52 = vlaneseq
    %v53 = vshrl.u32 %v52, 7
    %s54 = smul.u32 0, 8
    %v55 = vstv %s54
    %v56 = vadd.s32 %v53, %v55
    %vm57 = vcmp.lt.s32.totalorder %v56, 8
    %v58 = vsel %vm57, %v51, 0.0
    %vm59 = vcmask 7168
    %v60 = vsel %vm59, %v58, 0.0
    %61 = vadd.xlane.f32.xlu0 %v60
    %v62 = vpop.xlane.xlu0 %61
    %v63 = vrot.slane %v62, 4
    %v64 = vadd.f32 %v62, %v63
    %v65 = vrot.slane %v64, 2
    %v66 = vadd.f32 %v64, %v65
    %v67 = vrot.slane %v66, 1
    %v68 = vadd.f32 %v66, %v67
    %s69 = vtos %v68
    %v70 = vstv %s69
    %71 = vst [vmem:[#allocation2] sm:$0xff] %v70
    // Predicated region
    $region10: #{tpu_custom_call.1} parent=1 // pred_check
      _
    $region11: #{tpu_custom_call.1} parent=1 // pred_check_branch
      %73 = sbr.rel (0) target = $region13
    $region12: #{tpu_custom_call.1} parent=1 // pred_region
      %s75 = ssub.s32 128, 128
      %76 = vsyncadd [#allocation3], %s75
      %s78 = sshll.u32 [#allocation2], 4
      %s79 = int_to_ptr.vmem [resolvable:$true] %s78
      %81 = dma.vmem_to_hbm [thread:$0]  %s79, 128, %s2, [#allocation3]
    $region13: #{tpu_custom_call.1} parent=1 // pred_fallthru
      _
    // Predicated region
    $region14: #{tpu_custom_call.1} parent=1 // pred_check
      _
    $region15: #{tpu_custom_call.1} parent=1 // pred_check_branch
      %83 = sbr.rel (0) target = $region17
    $region16: #{tpu_custom_call.1} parent=1 // pred_region
      %84 = dma.done [#allocation3], 128
    $region17: #{tpu_custom_call.1} parent=1 // pred_fallthru
      _
    %85 = vsyncpa [#allocation3], 1

</llo_original>
